<compile_context>
chip_gen: v6e
topology: v6e:2x2x1
jax: 0.10.0
libtpu: 0.0.40
codegen_flags: <defaults>
</compile_context>

<pallas_src>
import math

import jax
import jax.numpy as jnp
from jax.experimental import pallas as pl
from jax.experimental.pallas import tpu as pltpu


def _round_up(x, m):
    return ((x + m - 1) // m) * m


def _pad2d(a, rows, cols, dtype):
    """Cast + pad only the ragged edge (no-op copy avoided when aligned)."""
    a = a.astype(dtype)
    pr, pc = rows - a.shape[0], cols - a.shape[1]
    if pr == 0 and pc == 0:
        return a
    return jnp.pad(a, ((0, pr), (0, pc)))


def _chip_defaults():
    """Return (tm_default, vmem_cap_bytes) tuned per TPU generation."""
    try:
        kind = jax.devices()[0].device_kind.lower()
    except Exception:  # pragma: no cover - defensive
        kind = ""
    compact = kind.replace(" ", "")
    is_v7 = ("v7" in kind) or ("tpu7" in compact)
    is_old = any(t in kind for t in ("v2", "v3", "v4", "v5")) and not is_v7
    tm = 128 if is_old else 256            # v5e MXU granule is 128; v6e/v7x 256
    if any(t in kind for t in ("v2", "v3")):
        cap = 12 << 20                      # tiny VMEM on very old gens
    elif is_v7:
        cap = 48 << 20                      # v7x: 64 MiB physical per TC
    else:
        cap = 96 << 20                      # v5e/v6e: 128 MiB physical
    return tm, cap


def _vmem_limit(est_bytes, cap):
    # 16 MiB floor (safe everywhere) + 4 MiB headroom for compiler scratch.
    return int(min(cap, max(est_bytes + (4 << 20), 16 << 20)))


# --------------------------- Phase 1: support = X @ W ------------------------

def _xw_resident_kernel(x_ref, w_ref, s_ref):
    # support row-tile = X_tile @ W  (full W resident; computed exactly once).
    s_ref[...] = jnp.dot(
        x_ref[...], w_ref[...], preferred_element_type=jnp.float32
    ).astype(s_ref.dtype)


def _xw_ktiled_kernel(x_ref, w_ref, s_ref, acc_ref):
    # Large-nfeat path: F-contraction grid axis with an f32 VMEM accumulator.
    kf = pl.program_id(1)

    @pl.when(kf == 0)
    def _():
        acc_ref[...] = jnp.zeros_like(acc_ref)

    acc_ref[...] += jnp.dot(
        x_ref[...], w_ref[...], preferred_element_type=jnp.float32)

    @pl.when(kf == pl.num_programs(1) - 1)
    def _():
        s_ref[...] = acc_ref[...].astype(s_ref.dtype)


# ----------------- Phase 2: out = ReLU(adj @ support + bias) -----------------

def _make_agg_kernel(support_resident, use_scratch, tk):
    def kernel(adj_ref, s_ref, b_ref, o_ref, *scratch):
        k = pl.program_id(1)
        # f32 output blocks accumulate in place; otherwise use f32 scratch.
        acc = scratch[0] if use_scratch else o_ref

        @pl.when(k == 0)
        def _():
            acc[...] = jnp.zeros_like(acc)

        if support_resident:
            # Whole support matrix lives in VMEM; slice the k-slab in kernel.
            off = pl.multiple_of(k * tk, tk)
            s = s_ref[pl.ds(off, tk), :]
        else:
            s = s_ref[...]

        acc[...] += jnp.dot(
            adj_ref[...], s, preferred_element_type=jnp.float32
        ).astype(acc.dtype)

        @pl.when(k == pl.num_programs(1) - 1)
        def _():
            # Bias + ReLU epilogue, once per output tile, in f32.
            out = acc[...].astype(jnp.float32) + b_ref[...].astype(jnp.float32)
            o_ref[...] = jnp.maximum(out, 0.0).astype(o_ref.dtype)

    return kernel


# --------------------------------- wrapper -----------------------------------

def gnn_encoder(x, adj, w, b, *, tm=None, tk=512, compute_dtype=None,
                support_resident_budget=6 << 20, w_resident_budget=8 << 20):
    """GNN_Encoder(layer='gcn') forward: ReLU(adj @ (x @ w) + b).

    compute_dtype: dtype for adj / x / w / support (accumulation is always
      f32).  Pass jnp.bfloat16 on v6e/v7x to halve HBM traffic of the purely
      bandwidth-bound aggregation.
    """
    out_dtype = x.dtype
    if compute_dtype is None:
        compute_dtype = x.dtype            # f32 default for bit-tight validation
    cbytes = jnp.dtype(compute_dtype).itemsize
    obytes = jnp.dtype(out_dtype).itemsize

    N, F = x.shape
    H = w.shape[1]

    default_tm, vmem_cap = _chip_defaults()
    if tm is None:
        tm = default_tm

    Fp = _round_up(F, 128)
    Hp = _round_up(H, 128)

    # Pad N up to a common multiple of the row tile and the adj k-tile so the
    # large tiles are actually used (no silent fallback to 128-wide tiles).
    Np0 = _round_up(N, 128)
    tm = min(tm, Np0)
    tk = min(tk, Np0)
    Np = _round_up(N, math.lcm(tm, tk))

    # Cast + ragged-edge padding (no full extra copy pass when aligned).
    xp = _pad2d(x, Np, Fp, compute_dtype)
    adjp = _pad2d(adj, Np, Np, compute_dtype)
    wp = _pad2d(w, Fp, Hp, compute_dtype)
    bp = _pad2d(b.reshape(1, -1), 1, Hp, jnp.float32)

    # ---------------- Phase 1: support = X @ W (hoisted, run once) ----------
    w_bytes = Fp * Hp * cbytes
    if w_bytes <= w_resident_budget:
        est1 = 2 * (tm * Fp + tm * Hp) * cbytes + 2 * w_bytes
        support = pl.pallas_call(
            _xw_resident_kernel,
            out_shape=jax.ShapeDtypeStruct((Np, Hp), compute_dtype),
            grid_spec=pltpu.PrefetchScalarGridSpec(
                num_scalar_prefetch=0,
                grid=(Np // tm,),
                in_specs=[
                    pl.BlockSpec((tm, Fp), lambda i: (i, 0)),   # X row tile
                    pl.BlockSpec((Fp, Hp), lambda i: (0, 0)),   # full W resident
                ],
                out_specs=pl.BlockSpec((tm, Hp), lambda i: (i, 0)),
            ),
            compiler_params=pltpu.CompilerParams(
                dimension_semantics=("parallel",),
                vmem_limit_bytes=_vmem_limit(est1, vmem_cap)),
        )(xp, wp)
    else:
        tf = max(t for t in (512, 256, 128) if Fp % t == 0)
        est1 = 2 * (tm * tf + tf * Hp + tm * Hp) * cbytes + tm * Hp * 4
        support = pl.pallas_call(
            _xw_ktiled_kernel,
            out_shape=jax.ShapeDtypeStruct((Np, Hp), compute_dtype),
            grid_spec=pltpu.PrefetchScalarGridSpec(
                num_scalar_prefetch=0,
                grid=(Np // tm, Fp // tf),
                in_specs=[
                    pl.BlockSpec((tm, tf), lambda i, kf: (i, kf)),
                    pl.BlockSpec((tf, Hp), lambda i, kf: (kf, 0)),
                ],
                out_specs=pl.BlockSpec((tm, Hp), lambda i, kf: (i, 0)),
                scratch_shapes=[pltpu.VMEM((tm, Hp), jnp.float32)],
            ),
            compiler_params=pltpu.CompilerParams(
                dimension_semantics=("parallel", "arbitrary"),
                vmem_limit_bytes=_vmem_limit(est1, vmem_cap)),
        )(xp, wp)

    # ---------------- Phase 2: out = ReLU(adj @ support + b) ----------------
    support_bytes = Np * Hp * cbytes
    support_resident = support_bytes <= support_resident_budget
    use_scratch = out_dtype != jnp.float32

    if support_resident:
        # Constant block index -> DMA'd from HBM exactly once, never re-streamed.
        s_spec = pl.BlockSpec((Np, Hp), lambda i, k: (0, 0))
        s_vmem = 2 * support_bytes
    else:
        s_spec = pl.BlockSpec((tk, Hp), lambda i, k: (k, 0))
        s_vmem = 2 * tk * Hp * cbytes

    est2 = (2 * tm * tk * cbytes + s_vmem + 2 * Hp * 4
            + 2 * tm * Hp * obytes + (tm * Hp * 4 if use_scratch else 0))

    kernel = _make_agg_kernel(support_resident, use_scratch, tk)
    scratch_shapes = [pltpu.VMEM((tm, Hp), jnp.float32)] if use_scratch else []

    out = pl.pallas_call(
        kernel,
        out_shape=jax.ShapeDtypeStruct((Np, Hp), out_dtype),
        grid_spec=pltpu.PrefetchScalarGridSpec(
            num_scalar_prefetch=0,
            grid=(Np // tm, Np // tk),
            in_specs=[
                pl.BlockSpec((tm, tk), lambda i, k: (i, k)),   # adj tile
                s_spec,                                          # support
                pl.BlockSpec((1, Hp), lambda i, k: (0, 0)),      # bias
            ],
            out_specs=pl.BlockSpec((tm, Hp), lambda i, k: (i, 0)),
            scratch_shapes=scratch_shapes,
        ),
        compiler_params=pltpu.CompilerParams(
            dimension_semantics=("parallel", "arbitrary"),
            vmem_limit_bytes=_vmem_limit(est2, vmem_cap)),
    )(adjp, support, bp)

    return out[:N, :H]


def reference(x, adj, w, b):
    return jnp.maximum(adj @ (x @ w) + b[None, :], 0.0)


if __name__ == "__main__":
    key = jax.random.PRNGKey(0)
    N, nfeat, nhid = 16, 32, 32

    k_x, k_a, k_w, k_b = jax.random.split(key, 4)

    # Node features
    x = jax.random.normal(k_x, (N, nfeat), dtype=jnp.float32)

    # Dense symmetric, self-looped, row-normalized adjacency (typical GCN adj)
    a = (jax.random.uniform(k_a, (N, N)) > 0.7).astype(jnp.float32)
    a = jnp.maximum(a, a.T) + jnp.eye(N, dtype=jnp.float32)
    adj = a / jnp.sum(a, axis=1, keepdims=True)

    # GraphConv.reset_parameters(): uniform(-stdv, stdv), stdv = 1/sqrt(nhid)
    stdv = 1.0 / (nhid ** 0.5)
    w = jax.random.uniform(k_w, (nfeat, nhid), minval=-stdv, maxval=stdv,
                           dtype=jnp.float32)
    b = jax.random.uniform(k_b, (nhid,), minval=-stdv, maxval=stdv,
                           dtype=jnp.float32)

    ref = reference(x, adj, w, b)

    # f32 path (bit-tight validation of module semantics)
    out = jax.block_until_ready(gnn_encoder(x, adj, w, b))
    assert out.shape == (N, nhid)
    assert jnp.allclose(out, ref, atol=1e-5, rtol=1e-5)

    # bf16 adj/x/w/support path (bandwidth-optimized; f32 accumulation)
    out_bf16 = jax.block_until_ready(
        gnn_encoder(x, adj, w, b, compute_dtype=jnp.bfloat16))
    assert out_bf16.shape == (N, nhid)
    assert jnp.allclose(out_bf16.astype(jnp.float32), ref, atol=5e-2, rtol=5e-2)

    print("KERNEL_OK")
</pallas_src>

<mosaic_0001>
module attributes {stable_mosaic.version = 11 : i64} {
  func.func @_xw_resident_kernel(%arg0: i32, %arg1: memref<128x128xf32, #tpu.memory_space<vmem>>, %arg2: memref<128x128xf32, #tpu.memory_space<vmem>>, %arg3: memref<128x128xf32, #tpu.memory_space<vmem>>) attributes {dimension_semantics = [#tpu.dimension_semantics<parallel>], iteration_bounds = array<i64: 1>, scalar_prefetch = 0 : i64, scratch_operands = 0 : i64, tpu.core_type = #tpu.core_type<tc>, window_params = [{transform_indices = @transform_0, window_bounds = array<i64: 128, 128>}, {pipeline_mode = #tpu.pipeline_mode<synchronous>, transform_indices = @transform_1, window_bounds = array<i64: 128, 128>}, {transform_indices = @transform_2, window_bounds = array<i64: 128, 128>}]} {
    %c0 = arith.constant 0 : index
    %c0_0 = arith.constant 0 : index
    %0 = vector.load %arg1[%c0, %c0_0] : memref<128x128xf32, #tpu.memory_space<vmem>>, vector<128x128xf32>
    %c0_1 = arith.constant 0 : index
    %c0_2 = arith.constant 0 : index
    %1 = vector.load %arg2[%c0_1, %c0_2] : memref<128x128xf32, #tpu.memory_space<vmem>>, vector<128x128xf32>
    %cst = arith.constant dense<0.000000e+00> : vector<128x128xf32>
    %2 = tpu.matmul %0, %1, %cst {dimension_numbers = #tpu.dot_dimension_numbers<[1], [0], [0], [1], [0, 0, 1, 1], [], []>} : vector<128x128xf32>, vector<128x128xf32>, vector<128x128xf32> -> vector<128x128xf32>
    %c0_3 = arith.constant 0 : index
    %c0_4 = arith.constant 0 : index
    %3 = vector.load %arg3[%c0_3, %c0_4] : memref<128x128xf32, #tpu.memory_space<vmem>>, vector<128x128xf32>
    tpu.vector_store %arg3[%c0_3, %c0_4], %2 {strides = array<i32>} : memref<128x128xf32, #tpu.memory_space<vmem>>, vector<128x128xf32>,
    return
  }
  func.func @transform_0(%arg0: i32) -> (i32, i32) {
    %c0_i32 = arith.constant 0 : i32
    %c0_i32_0 = arith.constant 0 : i32
    return %arg0, %c0_i32 : i32, i32
  }
  func.func @transform_1(%arg0: i32) -> (i32, i32) {
    %c0_i32 = arith.constant 0 : i32
    %c0_i32_0 = arith.constant 0 : i32
    %c0_i32_1 = arith.constant 0 : i32
    return %c0_i32, %c0_i32_0 : i32, i32
  }
  func.func @transform_2(%arg0: i32) -> (i32, i32) {
    %c0_i32 = arith.constant 0 : i32
    %c0_i32_0 = arith.constant 0 : i32
    return %arg0, %c0_i32 : i32, i32
  }
}

</mosaic_0001>

<llo_original>
// kernel: tpu_custom_call.1
$region0: #{tpu_custom_call.1}
  #allocation0 [shape = 'u32[]', space=smem, size = 0x4, offset = 0x4, fixed_abs, tag = 'smem constant byte address 0x4 - core index']
  #allocation1 [shape = 'u32[144,128]{1,0:T(1,128)}', space=vmem, size = 0x12000, scoped, tag = 'internal scratch']
  %s0 = inlined_call_operand.hbm [shape: f32[128,128], index: 0, kind: input, shape index: {}]
  %s1 = inlined_call_operand.hbm [shape: f32[128,128], index: 1, kind: input, shape index: {}]
  %s2 = inlined_call_operand.hbm [shape: f32[128,128], index: 2, kind: output, shape index: {}]
  %s3 = sld [smem:[#allocation0]]
  $region26: #{tpu_custom_call.1} parent=0
    _
  %s5 = ssub.s32 1, %s3
  %s6 = scalar_select 0, %s5, %s3
  $region1: #{tpu_custom_call.1} parent=0
    #allocation2 [shape = 'u8[65536]{0}', space=vmem, size = 0x10000, scoped, tag = 'input window, operand 0, single buffered']
    #allocation3 [shape = 's32[1]{0}', space=sflag, size = 0x4, scoped, tag = 'scoped memory for tpu_custom_call.1']
    #allocation4 [shape = 's32[1]{0}', space=sflag, size = 0x4, scoped, tag = 'scoped memory for tpu_custom_call.1']
    #allocation5 [shape = 'u8[65536]{0}', space=vmem, size = 0x10000, scoped, tag = 'input window, operand 1, single buffered']
    #allocation6 [shape = 's32[1]{0}', space=sflag, size = 0x4, scoped, tag = 'scoped memory for tpu_custom_call.1']
    #allocation7 [shape = 'u8[65536]{0}', space=vmem, size = 0x10000, scoped, tag = 'output window, operand 0, single buffered']
    %7 = vsyncpa [#allocation3], 0
    %8 = vsyncpa [#allocation6], 0
    %9 = vsyncpa [#allocation4], 0
    // Predicated region
    $region2: #{tpu_custom_call.1} parent=1 // pred_check
      _
    $region3: #{tpu_custom_call.1} parent=1 // pred_check_branch
      %11 = sbr.rel (0) target = $region5
    $region4: #{tpu_custom_call.1} parent=1 // pred_region
      %s13 = ssub.s32 2048, 2048
      %14 = vsyncadd [#allocation3], %s13
      %s15 = sshll.u32 [#allocation2], 4
      %s16 = int_to_ptr.vmem [resolvable:$true] %s15
      %21 = dma.hbm_to_vmem [thread:$0]  %s0, 2048, %s16, [#allocation3], 128, 128, 8
    $region5: #{tpu_custom_call.1} parent=1 // pred_fallthru
      _
    // Predicated region
    $region6: #{tpu_custom_call.1} parent=1 // pred_check
      _
    $region7: #{tpu_custom_call.1} parent=1 // pred_check_branch
      %23 = sbr.rel (0) target = $region9
    $region8: #{tpu_custom_call.1} parent=1 // pred_region
      %s25 = ssub.s32 2048, 2048
      %26 = vsyncadd [#allocation6], %s25
      %s27 = sshll.u32 [#allocation5], 4
      %s28 = int_to_ptr.vmem [resolvable:$true] %s27
      %33 = dma.hbm_to_vmem [thread:$0]  %s1, 2048, %s28, [#allocation6], 128, 128, 8
    $region9: #{tpu_custom_call.1} parent=1 // pred_fallthru
      _
    // Predicated region
    $region10: #{tpu_custom_call.1} parent=1 // pred_check
      _
    $region11: #{tpu_custom_call.1} parent=1 // pred_check_branch
      %35 = sbr.rel (0) target = $region13
    $region12: #{tpu_custom_call.1} parent=1 // pred_region
      %36 = dma.done [#allocation3], 2048
    $region13: #{tpu_custom_call.1} parent=1 // pred_fallthru
      _
    // Predicated region
    $region14: #{tpu_custom_call.1} parent=1 // pred_check
      _
    $region15: #{tpu_custom_call.1} parent=1 // pred_check_branch
      %38 = sbr.rel (0) target = $region17
    $region16: #{tpu_custom_call.1} parent=1 // pred_region
      %39 = dma.done [#allocation6], 2048
    $region17: #{tpu_custom_call.1} parent=1 // pred_fallthru
      _
    %v40 = vld [vmem:[#allocation2] sm:$0xff]
    %v41 = vld [vmem:[#allocation2 + $0x8] sm:$0xff]
    %v42 = vld [vmem:[#allocation2 + $0x10] sm:$0xff]
    %v43 = vld [vmem:[#allocation2 + $0x18] sm:$0xff]
    %v44 = vld [vmem:[#allocation2 + $0x20] sm:$0xff]
    %v45 = vld [vmem:[#allocation2 + $0x28] sm:$0xff]
    %v46 = vld [vmem:[#allocation2 + $0x30] sm:$0xff]
    %v47 = vld [vmem:[#allocation2 + $0x38] sm:$0xff]
    %v48 = vld [vmem:[#allocation2 + $0x40] sm:$0xff]
    %v49 = vld [vmem:[#allocation2 + $0x48] sm:$0xff]
    %v50 = vld [vmem:[#allocation2 + $0x50] sm:$0xff]
    %v51 = vld [vmem:[#allocation2 + $0x58] sm:$0xff]
    %v52 = vld [vmem:[#allocation2 + $0x60] sm:$0xff]
    %v53 = vld [vmem:[#allocation2 + $0x68] sm:$0xff]
    %v54 = vld [vmem:[#allocation2 + $0x70] sm:$0xff]
    %v55 = vld [vmem:[#allocation2 + $0x78] sm:$0xff]
    %v56 = vld [vmem:[#allocation5] sm:$0xff]
    %v57 = vld [vmem:[#allocation5 + $0x8] sm:$0xff]
    %v58 = vld [vmem:[#allocation5 + $0x10] sm:$0xff]
    %v59 = vld [vmem:[#allocation5 + $0x18] sm:$0xff]
    %v60 = vld [vmem:[#allocation5 + $0x20] sm:$0xff]
    %v61 = vld [vmem:[#allocation5 + $0x28] sm:$0xff]
    %v62 = vld [vmem:[#allocation5 + $0x30] sm:$0xff]
    %v63 = vld [vmem:[#allocation5 + $0x38] sm:$0xff]
    %v64 = vld [vmem:[#allocation5 + $0x40] sm:$0xff]
    %v65 = vld [vmem:[#allocation5 + $0x48] sm:$0xff]
    %v66 = vld [vmem:[#allocation5 + $0x50] sm:$0xff]
    %v67 = vld [vmem:[#allocation5 + $0x58] sm:$0xff]
    %v68 = vld [vmem:[#allocation5 + $0x60] sm:$0xff]
    %v69 = vld [vmem:[#allocation5 + $0x68] sm:$0xff]
    %v70 = vld [vmem:[#allocation5 + $0x70] sm:$0xff]
    %v71 = vld [vmem:[#allocation5 + $0x78] sm:$0xff]
    %72 = vmatprep.subr.mxu0 0.0
    %73 = vmatpush1.msra.mxu0 %v71
    %74 = vmatprep.subr.mxu0 0.0
    %75 = vmatpush1.msra.mxu0 %v70
    %76 = vmatprep.subr.mxu0 0.0
    %77 = vmatpush1.msra.mxu0 %v69
    %78 = vmatprep.subr.mxu0 0.0
    %79 = vmatpush1.msra.mxu0 %v68
    %80 = vmatprep.subr.mxu0 0.0
    %81 = vmatpush1.msra.mxu0 %v67
    %82 = vmatprep.subr.mxu0 0.0
    %83 = vmatpush1.msra.mxu0 %v66
    %84 = vmatprep.subr.mxu0 0.0
    %85 = vmatpush1.msra.mxu0 %v65
    %86 = vmatprep.subr.mxu0 0.0
    %87 = vmatpush1.msra.mxu0 %v64
    %88 = vmatprep.subr.mxu0 0.0
    %89 = vmatpush1.msra.mxu0 %v63
    %90 = vmatprep.subr.mxu0 0.0
    %91 = vmatpush1.msra.mxu0 %v62
    %92 = vmatprep.subr.mxu0 0.0
    %93 = vmatpush1.msra.mxu0 %v61
    %94 = vmatprep.subr.mxu0 0.0
    %95 = vmatpush1.msra.mxu0 %v60
    %96 = vmatprep.subr.mxu0 0.0
    %97 = vmatpush1.msra.mxu0 %v59
    %98 = vmatprep.subr.mxu0 0.0
    %99 = vmatpush1.msra.mxu0 %v58
    %100 = vmatprep.subr.mxu0 0.0
    %101 = vmatpush1.msra.mxu0 %v57
    %102 = vmatprep.subr.mxu0 0.0
    %103 = vmatpush1.msra.mxu0 %v56
    %104 = vmatprep.subr.mxu0 0.0
    %105 = vmatpush2.msra.mxu0 0.0
    %106 = vmatprep.subr.mxu0 0.0
    %107 = vmatpush2.msra.mxu0 0.0
    %108 = vmatprep.subr.mxu0 0.0
    %109 = vmatpush2.msra.mxu0 0.0
    %110 = vmatprep.subr.mxu0 0.0
    %111 = vmatpush2.msra.mxu0 0.0
    %112 = vmatprep.subr.mxu0 0.0
    %113 = vmatpush2.msra.mxu0 0.0
    %114 = vmatprep.subr.mxu0 0.0
    %115 = vmatpush2.msra.mxu0 0.0
    %116 = vmatprep.subr.mxu0 0.0
    %117 = vmatpush2.msra.mxu0 0.0
    %118 = vmatprep.subr.mxu0 0.0
    %119 = vmatpush2.msra.mxu0 0.0
    %120 = vmatprep.subr.mxu0 0.0
    %121 = vmatpush2.msra.mxu0 0.0
    %122 = vmatprep.subr.mxu0 0.0
    %123 = vmatpush2.msra.mxu0 0.0
    %124 = vmatprep.subr.mxu0 0.0
    %125 = vmatpush2.msra.mxu0 0.0
    %126 = vmatprep.subr.mxu0 0.0
    %127 = vmatpush2.msra.mxu0 0.0
    %128 = vmatprep.subr.mxu0 0.0
    %129 = vmatpush2.msra.mxu0 0.0
    %130 = vmatprep.subr.mxu0 0.0
    %131 = vmatpush2.msra.mxu0 0.0
    %132 = vmatprep.subr.mxu0 0.0
    %133 = vmatpush2.msra.mxu0 0.0
    %134 = vmatprep.subr.mxu0 0.0
    %135 = vmatpush2.msra.mxu0 0.0
    %136 = vmatprep.mubr.f32.mxu0 0.0
    %137 = vmatmul.mubr.f32.gmra.mxu0 %v40
    %v138 = vpop.f32.mrf.mxu0
    %v139 = vadd.f32 0.0, %v138
    %v140 = vpop.f32.mrf.mxu0
    %141 = vmatprep.mubr.f32.mxu0 0.0
    %142 = vmatmul.mubr.f32.gmra.mxu0 %v41
    %v143 = vpop.f32.mrf.mxu0
    %v144 = vadd.f32 0.0, %v143
    %v145 = vpop.f32.mrf.mxu0
    %146 = vmatprep.mubr.f32.mxu0 0.0
    %147 = vmatmul.mubr.f32.gmra.mxu0 %v42
    %v148 = vpop.f32.mrf.mxu0
    %v149 = vadd.f32 0.0, %v148
    %v150 = vpop.f32.mrf.mxu0
    %151 = vmatprep.mubr.f32.mxu0 0.0
    %152 = vmatmul.mubr.f32.gmra.mxu0 %v43
    %v153 = vpop.f32.mrf.mxu0
    %v154 = vadd.f32 0.0, %v153
    %v155 = vpop.f32.mrf.mxu0
    %156 = vmatprep.mubr.f32.mxu0 0.0
    %157 = vmatmul.mubr.f32.gmra.mxu0 %v44
    %v158 = vpop.f32.mrf.mxu0
    %v159 = vadd.f32 0.0, %v158
    %v160 = vpop.f32.mrf.mxu0
    %161 = vmatprep.mubr.f32.mxu0 0.0
    %162 = vmatmul.mubr.f32.gmra.mxu0 %v45
    %v163 = vpop.f32.mrf.mxu0
    %v164 = vadd.f32 0.0, %v163
    %v165 = vpop.f32.mrf.mxu0
    %166 = vmatprep.mubr.f32.mxu0 0.0
    %167 = vmatmul.mubr.f32.gmra.mxu0 %v46
    %v168 = vpop.f32.mrf.mxu0
    %v169 = vadd.f32 0.0, %v168
    %v170 = vpop.f32.mrf.mxu0
    %171 = vmatprep.mubr.f32.mxu0 0.0
    %172 = vmatmul.mubr.f32.gmra.mxu0 %v47
    %v173 = vpop.f32.mrf.mxu0
    %v174 = vadd.f32 0.0, %v173
    %v175 = vpop.f32.mrf.mxu0
    %176 = vmatprep.mubr.f32.mxu0 0.0
    %177 = vmatmul.mubr.f32.gmra.mxu0 %v48
    %v178 = vpop.f32.mrf.mxu0
    %v179 = vadd.f32 0.0, %v178
    %v180 = vpop.f32.mrf.mxu0
    %181 = vmatprep.mubr.f32.mxu0 0.0
    %182 = vmatmul.mubr.f32.gmra.mxu0 %v49
    %v183 = vpop.f32.mrf.mxu0
    %v184 = vadd.f32 0.0, %v183
    %v185 = vpop.f32.mrf.mxu0
    %186 = vmatprep.mubr.f32.mxu0 0.0
    %187 = vmatmul.mubr.f32.gmra.mxu0 %v50
    %v188 = vpop.f32.mrf.mxu0
    %v189 = vadd.f32 0.0, %v188
    %v190 = vpop.f32.mrf.mxu0
    %191 = vmatprep.mubr.f32.mxu0 0.0
    %192 = vmatmul.mubr.f32.gmra.mxu0 %v51
    %v193 = vpop.f32.mrf.mxu0
    %v194 = vadd.f32 0.0, %v193
    %v195 = vpop.f32.mrf.mxu0
    %196 = vmatprep.mubr.f32.mxu0 0.0
    %197 = vmatmul.mubr.f32.gmra.mxu0 %v52
    %v198 = vpop.f32.mrf.mxu0
    %v199 = vadd.f32 0.0, %v198
    %v200 = vpop.f32.mrf.mxu0
    %201 = vmatprep.mubr.f32.mxu0 0.0
    %202 = vmatmul.mubr.f32.gmra.mxu0 %v53
    %v203 = vpop.f32.mrf.mxu0
    %v204 = vadd.f32 0.0, %v203
    %v205 = vpop.f32.mrf.mxu0
    %206 = vmatprep.mubr.f32.mxu0 0.0
    %207 = vmatmul.mubr.f32.gmra.mxu0 %v54
    %v208 = vpop.f32.mrf.mxu0
    %v209 = vadd.f32 0.0, %v208
    %v210 = vpop.f32.mrf.mxu0
    %211 = vmatprep.mubr.f32.mxu0 0.0
    %212 = vmatmul.mubr.f32.gmra.mxu0 %v55
    %v213 = vpop.f32.mrf.mxu0
    %v214 = vadd.f32 0.0, %v213
    %v215 = vpop.f32.mrf.mxu0
    %216 = vdwg.mxu0
    %217 = vst [vmem:[#allocation7] sm:$0xff] %v139
    %218 = vst [vmem:[#allocation7 + $0x8] sm:$0xff] %v144
    %219 = vst [vmem:[#allocation7 + $0x10] sm:$0xff] %v149
    %220 = vst [vmem:[#allocation7 + $0x18] sm:$0xff] %v154
    %221 = vst [vmem:[#allocation7 + $0x20] sm:$0xff] %v159
    %222 = vst [vmem:[#allocation7 + $0x28] sm:$0xff] %v164
    %223 = vst [vmem:[#allocation7 + $0x30] sm:$0xff] %v169
    %224 = vst [vmem:[#allocation7 + $0x38] sm:$0xff] %v174
    %225 = vst [vmem:[#allocation7 + $0x40] sm:$0xff] %v179
    %226 = vst [vmem:[#allocation7 + $0x48] sm:$0xff] %v184
    %227 = vst [vmem:[#allocation7 + $0x50] sm:$0xff] %v189
    %228 = vst [vmem:[#allocation7 + $0x58] sm:$0xff] %v194
    %229 = vst [vmem:[#allocation7 + $0x60] sm:$0xff] %v199
    %230 = vst [vmem:[#allocation7 + $0x68] sm:$0xff] %v204
    %231 = vst [vmem:[#allocation7 + $0x70] sm:$0xff] %v209
    %232 = vst [vmem:[#allocation7 + $0x78] sm:$0xff] %v214
    // Predicated region
    $region18: #{tpu_custom_call.1} parent=1 // pred_check
      _
    $region19: #{tpu_custom_call.1} parent=1 // pred_check_branch
      %234 = sbr.rel (0) target = $region21
    $region20: #{tpu_custom_call.1} parent=1 // pred_region
      %s236 = ssub.s32 2048, 2048
      %237 = vsyncadd [#allocation4], %s236
      %s238 = sshll.u32 [#allocation7], 4
      %s239 = int_to_ptr.vmem [resolvable:$true] %s238
      %244 = dma.vmem_to_hbm [thread:$0]  %s239, 2048, %s2, [#allocation4], 128, 128, 8
    $region21: #{tpu_custom_call.1} parent=1 // pred_fallthru
      _
    // Predicated region
    $region22: #{tpu_custom_call.1} parent=1 // pred_check
      _
    $region23: #{tpu_custom_call.1} parent=1 // pred_check_branch
      %246 = sbr.rel (0) target = $region25
    $region24: #{tpu_custom_call.1} parent=1 // pred_region
      %247 = dma.done [#allocation4], 2048
    $region25: #{tpu_custom_call.1} parent=1 // pred_fallthru
      _
    %248 = vsyncpa [#allocation3], 1
    %249 = vsyncpa [#allocation6], 1
    %250 = vsyncpa [#allocation4], 1

</llo_original>
